<compile_context>
chip_gen: v7x
topology: tpu7x:2x2x1
jax: 0.10.0
libtpu: 0.0.40
codegen_flags: <defaults>
</compile_context>

<pallas_src>
import jax
import jax.numpy as jnp
from jax.experimental import pallas as pl
from jax.experimental.pallas import tpu as pltpu

EPS = 1e-6          # DiceLoss / AdaptiveDiceLoss eps (module default)
L1_SCALE = 10.0     # L1DiceLoss l1_scale (module default)

_N_PARTIALS = 7     # number of scalar reductions produced per tile


def _make_partials_kernel(H, th_rows, ragged):
    """Kernel closure: per (batch, row-tile) block -> 7 partial sums in lanes 0..6."""

    def kernel(binary_ref, tbin_ref, thresh_ref, tmap_ref,
               gt_ref, mask_ref, tmask_ref, out_ref):
        # Upcast in-kernel: inputs keep whatever (possibly narrow) dtype the caller used.
        binary = binary_ref[...].astype(jnp.float32)        # (TH, W)
        tbin = tbin_ref[...].astype(jnp.float32)
        thresh = thresh_ref[...].astype(jnp.float32)
        tmap = tmap_ref[...].astype(jnp.float32)
        gt = gt_ref[...].astype(jnp.float32)
        mask = mask_ref[...].astype(jnp.float32)
        tmask = tmask_ref[...].astype(jnp.float32)

        if ragged:
            # Last row-tile extends past H: zero every map on invalid rows so no
            # out-of-bounds garbage (even NaN/Inf) can reach the sums.
            j = pl.program_id(1)
            row = jax.lax.broadcasted_iota(jnp.int32, binary.shape, 0)
            valid = (j * th_rows + row) < H
            binary = jnp.where(valid, binary, 0.0)
            tbin = jnp.where(valid, tbin, 0.0)
            thresh = jnp.where(valid, thresh, 0.0)
            tmap = jnp.where(valid, tmap, 0.0)
            gt = jnp.where(valid, gt, 0.0)
            mask = jnp.where(valid, mask, 0.0)
            tmask = jnp.where(valid, tmask, 0.0)

        gm = gt * mask
        partials = (
            jnp.sum(binary * gm),                        # 0: intersection (binary dice)
            jnp.sum(binary * mask),                      # 1: pred*mask    (binary dice)
            jnp.sum(gm),                                 # 2: gt*mask      (both dices)
            jnp.sum(tbin * gm),                          # 3: intersection (thresh_binary dice)
            jnp.sum(tbin * mask),                        # 4: pred*mask    (thresh_binary dice)
            jnp.sum(tmask),                              # 5: thresh_mask sum (MaskL1)
            jnp.sum(jnp.abs(thresh - tmap) * tmask),     # 6: masked L1 numerator
        )

        # Lane-dense (8, 128) output tile: scalar k lives in lane k.
        lane = jax.lax.broadcasted_iota(jnp.int32, (8, 128), 1)
        tile = jnp.zeros((8, 128), jnp.float32)
        for k, val in enumerate(partials):
            tile = jnp.where(lane == k, val, tile)
        out_ref[...] = tile

    return kernel


def _sublane_multiple(dtype):
    item = jnp.dtype(dtype).itemsize
    return max(8, 32 // max(item, 1))     # f32 -> 8, bf16 -> 16, int8/bool -> 32


def _choose_row_tile(N, H, W, dtypes, vmem_budget):
    """Row-tile height: sublane-aligned, ~2 MiB per f32 input block, >= 8 grid steps,
    even total steps for odd N (v7x megacore), double-buffered set within VMEM budget."""
    align = max(_sublane_multiple(dt) for dt in dtypes)
    if H <= align:
        return H                                           # tiny plane: full block

    lanes = pl.cdiv(W, 128) * 128                          # VMEM lane padding
    row_bytes = lanes * sum(jnp.dtype(dt).itemsize for dt in dtypes)

    cap_vmem = max(align, vmem_budget // (2 * row_bytes))  # (a) fits double-buffered budget
    cap_block = max(align, (2 << 20) // (lanes * 4))       # (b) ~2 MiB f32 blocks (DMA sweet spot)
    want_gh = pl.cdiv(8, N)                                # (c) N * gh >= ~8 total steps
    cap_steps = max(align, H // want_gh) if H >= align * want_gh else H

    th = min(H, cap_vmem, cap_block, cap_steps)
    th = max(align, (th // align) * align)
    th = min(th, H)

    # Prefer an even total step count for odd batch sizes (v7x TensorCore balance).
    if N % 2 == 1:
        t = th
        while t > align and (N * pl.cdiv(H, t)) % 2 == 1:
            t -= align
        if t >= align and (N * pl.cdiv(H, t)) % 2 == 0:
            th = t
    return th


def _block_vmem_bytes(th, W, dtypes):
    """Per-step VMEM footprint of all input blocks, including (sublane, lane) padding."""
    lanes = pl.cdiv(W, 128) * 128
    total = 0
    for dt in dtypes:
        item = jnp.dtype(dt).itemsize
        sub = _sublane_multiple(dt)
        rows = pl.cdiv(th, sub) * sub
        total += rows * lanes * item
    return total


@jax.jit
def _l1_dice_loss_impl(binary, thresh, thresh_binary, gt, mask,
                       thresh_map, thresh_mask):
    N, H, W = binary.shape
    inputs = (binary, thresh_binary, thresh, thresh_map, gt, mask, thresh_mask)
    dtypes = [x.dtype for x in inputs]

    # Generation-aware VMEM sizing (v5e/v6e: 128 MiB, v7x: 64 MiB).
    try:
        vmem_cap = int(pltpu.get_tpu_info().vmem_capacity_bytes)
    except Exception:
        vmem_cap = 64 << 20            # conservative (v7x-safe) fallback
    vmem_budget = int(vmem_cap * 0.45)

    th_rows = _choose_row_tile(N, H, W, dtypes, vmem_budget)
    gh = pl.cdiv(H, th_rows)
    ragged = (H % th_rows) != 0
    grid = (N, gh)

    def map_spec():
        return pl.BlockSpec((None, th_rows, W), lambda i, j: (i, j, 0))

    out_spec = pl.BlockSpec((None, None, 8, 128), lambda i, j: (i, j, 0, 0))

    block_bytes = _block_vmem_bytes(th_rows, W, dtypes)
    vmem_limit = int(min(0.85 * vmem_cap,
                         max(2 * block_bytes + (6 << 20), 16 << 20)))

    bytes_px = sum(jnp.dtype(dt).itemsize for dt in dtypes)
    cost = pl.CostEstimate(
        flops=int(14 * N * H * W),
        transcendentals=0,
        bytes_accessed=int(bytes_px * N * H * W) + N * gh * 8 * 128 * 4)

    parts = pl.pallas_call(
        _make_partials_kernel(H, th_rows, ragged),
        grid=grid,
        in_specs=[map_spec() for _ in range(7)],
        out_specs=out_spec,
        out_shape=jax.ShapeDtypeStruct((N, gh, 8, 128), jnp.float32),
        compiler_params=pltpu.CompilerParams(
            dimension_semantics=("parallel", "parallel"),
            vmem_limit_bytes=vmem_limit),
        cost_estimate=cost,
    )(*inputs)

    # Tiny (N*gh, 128) reduction + O(1) scalar algebra in plain JAX.
    sums = jnp.sum(parts[:, :, 0, :], axis=(0, 1))            # (128,)
    inter_b, pm_b, gm_s, inter_t, pm_t, msum, l1num = (
        sums[k] for k in range(_N_PARTIALS))

    main_loss = 1.0 - 2.0 * inter_b / (pm_b + gm_s + EPS)
    thresh_loss = 1.0 - 2.0 * inter_t / (pm_t + gm_s + EPS)
    # MaskL1Loss: return 0 when the mask is empty; safe divisor avoids transient inf/nan.
    l1_loss = jnp.where(msum == 0.0, 0.0, l1num / jnp.maximum(msum, 1.0))

    loss = main_loss + thresh_loss + L1_SCALE * l1_loss
    metrics = dict(main_loss=main_loss, thresh_loss=thresh_loss, l1_loss=l1_loss)
    return loss, metrics


def l1_dice_loss(pred, batch):
    """Mirrors L1DiceLoss.forward(pred, batch).

    pred['binary'/'thresh'/'thresh_binary'] are NCHW with C=1; batch maps may be
    (N, H, W) or (N, 1, H, W).  0/1 maps may be passed in any dtype (f32/bf16/int8);
    they are upcast inside the kernel, so narrower dtypes directly cut HBM traffic.
    """
    squeeze = lambda x: x[:, 0] if x.ndim == 4 else x
    return _l1_dice_loss_impl(
        squeeze(pred['binary']), squeeze(pred['thresh']),
        squeeze(pred['thresh_binary']), squeeze(batch['gt']),
        squeeze(batch['mask']), squeeze(batch['thresh_map']),
        squeeze(batch['thresh_mask']))


def _reference(binary, thresh, thresh_binary, gt, mask, thresh_map, thresh_mask):
    """Pure-jnp reference mirroring the PyTorch L1DiceLoss, for self-verification."""
    def dice(pred, gt_, mask_):
        inter = jnp.sum(pred * gt_ * mask_)
        union = jnp.sum(pred * mask_) + jnp.sum(gt_ * mask_) + EPS
        return 1.0 - 2.0 * inter / union

    main_loss = dice(binary, gt, mask)
    thresh_loss = dice(thresh_binary, gt, mask)
    msum = jnp.sum(thresh_mask)
    l1_loss = jnp.where(
        msum == 0.0, 0.0,
        jnp.sum(jnp.abs(thresh - thresh_map) * thresh_mask) / jnp.maximum(msum, 1.0))
    loss = main_loss + thresh_loss + L1_SCALE * l1_loss
    return loss, dict(main_loss=main_loss, thresh_loss=thresh_loss, l1_loss=l1_loss)


if __name__ == "__main__":
    N, H, W = 2, 16, 16
    key = jax.random.PRNGKey(0)
    ks = jax.random.split(key, 7)
    pred = {
        'binary': jax.nn.sigmoid(jax.random.normal(ks[0], (N, 1, H, W), jnp.float32)),
        'thresh': jax.nn.sigmoid(jax.random.normal(ks[1], (N, 1, H, W), jnp.float32)),
        'thresh_binary': jax.nn.sigmoid(jax.random.normal(ks[2], (N, 1, H, W), jnp.float32)),
    }
    batch = {
        'gt': (jax.random.uniform(ks[3], (N, 1, H, W)) > 0.5).astype(jnp.float32),
        'mask': (jax.random.uniform(ks[4], (N, H, W)) > 0.2).astype(jnp.float32),
        'thresh_map': jax.random.uniform(ks[5], (N, H, W), jnp.float32),
        'thresh_mask': (jax.random.uniform(ks[6], (N, H, W)) > 0.5).astype(jnp.float32),
    }

    loss, metrics = l1_dice_loss(pred, batch)
    loss = jax.block_until_ready(loss)
    jax.block_until_ready(metrics)

    ref_loss, ref_metrics = _reference(
        pred['binary'][:, 0], pred['thresh'][:, 0], pred['thresh_binary'][:, 0],
        batch['gt'][:, 0], batch['mask'], batch['thresh_map'], batch['thresh_mask'])

    assert jnp.allclose(loss, ref_loss, rtol=1e-4, atol=1e-5), (loss, ref_loss)
    for k in ('main_loss', 'thresh_loss', 'l1_loss'):
        assert jnp.allclose(metrics[k], ref_metrics[k], rtol=1e-4, atol=1e-5), (
            k, metrics[k], ref_metrics[k])
    print("KERNEL_OK")
</pallas_src>

<mosaic_0001>
module attributes {stable_mosaic.version = 11 : i64} {
  func.func @kernel(%arg0: i32, %arg1: i32, %arg2: memref<1x16x16xf32, #tpu.memory_space<vmem>>, %arg3: memref<1x16x16xf32, #tpu.memory_space<vmem>>, %arg4: memref<1x16x16xf32, #tpu.memory_space<vmem>>, %arg5: memref<1x16x16xf32, #tpu.memory_space<vmem>>, %arg6: memref<1x16x16xf32, #tpu.memory_space<vmem>>, %arg7: memref<1x16x16xf32, #tpu.memory_space<vmem>>, %arg8: memref<1x16x16xf32, #tpu.memory_space<vmem>>, %arg9: memref<1x1x8x128xf32, #tpu.memory_space<vmem>>) attributes {dimension_semantics = [#tpu.dimension_semantics<parallel>, #tpu.dimension_semantics<parallel>], iteration_bounds = array<i64: 2, 1>, scalar_prefetch = 0 : i64, scratch_operands = 0 : i64, tpu.core_type = #tpu.core_type<tc>, window_params = [{transform_indices = @transform_0, window_bounds = array<i64: 1, 16, 16>}, {transform_indices = @transform_1, window_bounds = array<i64: 1, 16, 16>}, {transform_indices = @transform_2, window_bounds = array<i64: 1, 16, 16>}, {transform_indices = @transform_3, window_bounds = array<i64: 1, 16, 16>}, {transform_indices = @transform_4, window_bounds = array<i64: 1, 16, 16>}, {transform_indices = @transform_5, window_bounds = array<i64: 1, 16, 16>}, {transform_indices = @transform_6, window_bounds = array<i64: 1, 16, 16>}, {transform_indices = @transform_7, window_bounds = array<i64: 1, 1, 8, 128>}]} {
    %c0 = arith.constant 0 : index
    %c0_0 = arith.constant 0 : index
    %c0_1 = arith.constant 0 : index
    %0 = vector.load %arg2[%c0, %c0_0, %c0_1] : memref<1x16x16xf32, #tpu.memory_space<vmem>>, vector<1x16x16xf32>
    %1 = vector.shape_cast %0 : vector<1x16x16xf32> to vector<16x16xf32>
    %c0_2 = arith.constant 0 : index
    %c0_3 = arith.constant 0 : index
    %c0_4 = arith.constant 0 : index
    %2 = vector.load %arg3[%c0_2, %c0_3, %c0_4] : memref<1x16x16xf32, #tpu.memory_space<vmem>>, vector<1x16x16xf32>
    %3 = vector.shape_cast %2 : vector<1x16x16xf32> to vector<16x16xf32>
    %c0_5 = arith.constant 0 : index
    %c0_6 = arith.constant 0 : index
    %c0_7 = arith.constant 0 : index
    %4 = vector.load %arg4[%c0_5, %c0_6, %c0_7] : memref<1x16x16xf32, #tpu.memory_space<vmem>>, vector<1x16x16xf32>
    %5 = vector.shape_cast %4 : vector<1x16x16xf32> to vector<16x16xf32>
    %c0_8 = arith.constant 0 : index
    %c0_9 = arith.constant 0 : index
    %c0_10 = arith.constant 0 : index
    %6 = vector.load %arg5[%c0_8, %c0_9, %c0_10] : memref<1x16x16xf32, #tpu.memory_space<vmem>>, vector<1x16x16xf32>
    %7 = vector.shape_cast %6 : vector<1x16x16xf32> to vector<16x16xf32>
    %c0_11 = arith.constant 0 : index
    %c0_12 = arith.constant 0 : index
    %c0_13 = arith.constant 0 : index
    %8 = vector.load %arg6[%c0_11, %c0_12, %c0_13] : memref<1x16x16xf32, #tpu.memory_space<vmem>>, vector<1x16x16xf32>
    %9 = vector.shape_cast %8 : vector<1x16x16xf32> to vector<16x16xf32>
    %c0_14 = arith.constant 0 : index
    %c0_15 = arith.constant 0 : index
    %c0_16 = arith.constant 0 : index
    %10 = vector.load %arg7[%c0_14, %c0_15, %c0_16] : memref<1x16x16xf32, #tpu.memory_space<vmem>>, vector<1x16x16xf32>
    %11 = vector.shape_cast %10 : vector<1x16x16xf32> to vector<16x16xf32>
    %c0_17 = arith.constant 0 : index
    %c0_18 = arith.constant 0 : index
    %c0_19 = arith.constant 0 : index
    %12 = vector.load %arg8[%c0_17, %c0_18, %c0_19] : memref<1x16x16xf32, #tpu.memory_space<vmem>>, vector<1x16x16xf32>
    %13 = vector.shape_cast %12 : vector<1x16x16xf32> to vector<16x16xf32>
    %14 = arith.mulf %9, %11 : vector<16x16xf32>
    %15 = arith.mulf %1, %14 : vector<16x16xf32>
    %16 = vector.shape_cast %15 : vector<16x16xf32> to vector<1x16x16xf32>
    %cst = arith.constant dense<0.000000e+00> : vector<1xf32>
    %17 = vector.multi_reduction <add>, %16, %cst [1, 2] : vector<1x16x16xf32> to vector<1xf32>
    %18 = vector.shape_cast %17 : vector<1xf32> to vector<1x1x1xf32>
    %19 = vector.extract %18[0, 0, 0] : f32 from vector<1x1x1xf32>
    %20 = arith.mulf %1, %11 : vector<16x16xf32>
    %21 = vector.shape_cast %20 : vector<16x16xf32> to vector<1x16x16xf32>
    %cst_20 = arith.constant dense<0.000000e+00> : vector<1xf32>
    %22 = vector.multi_reduction <add>, %21, %cst_20 [1, 2] : vector<1x16x16xf32> to vector<1xf32>
    %23 = vector.shape_cast %22 : vector<1xf32> to vector<1x1x1xf32>
    %24 = vector.extract %23[0, 0, 0] : f32 from vector<1x1x1xf32>
    %25 = vector.shape_cast %14 : vector<16x16xf32> to vector<1x16x16xf32>
    %cst_21 = arith.constant dense<0.000000e+00> : vector<1xf32>
    %26 = vector.multi_reduction <add>, %25, %cst_21 [1, 2] : vector<1x16x16xf32> to vector<1xf32>
    %27 = vector.shape_cast %26 : vector<1xf32> to vector<1x1x1xf32>
    %28 = vector.extract %27[0, 0, 0] : f32 from vector<1x1x1xf32>
    %29 = arith.mulf %3, %14 : vector<16x16xf32>
    %30 = vector.shape_cast %29 : vector<16x16xf32> to vector<1x16x16xf32>
    %cst_22 = arith.constant dense<0.000000e+00> : vector<1xf32>
    %31 = vector.multi_reduction <add>, %30, %cst_22 [1, 2] : vector<1x16x16xf32> to vector<1xf32>
    %32 = vector.shape_cast %31 : vector<1xf32> to vector<1x1x1xf32>
    %33 = vector.extract %32[0, 0, 0] : f32 from vector<1x1x1xf32>
    %34 = arith.mulf %3, %11 : vector<16x16xf32>
    %35 = vector.shape_cast %34 : vector<16x16xf32> to vector<1x16x16xf32>
    %cst_23 = arith.constant dense<0.000000e+00> : vector<1xf32>
    %36 = vector.multi_reduction <add>, %35, %cst_23 [1, 2] : vector<1x16x16xf32> to vector<1xf32>
    %37 = vector.shape_cast %36 : vector<1xf32> to vector<1x1x1xf32>
    %38 = vector.extract %37[0, 0, 0] : f32 from vector<1x1x1xf32>
    %39 = vector.shape_cast %13 : vector<16x16xf32> to vector<1x16x16xf32>
    %cst_24 = arith.constant dense<0.000000e+00> : vector<1xf32>
    %40 = vector.multi_reduction <add>, %39, %cst_24 [1, 2] : vector<1x16x16xf32> to vector<1xf32>
    %41 = vector.shape_cast %40 : vector<1xf32> to vector<1x1x1xf32>
    %42 = vector.extract %41[0, 0, 0] : f32 from vector<1x1x1xf32>
    %43 = arith.subf %5, %7 : vector<16x16xf32>
    %44 = math.absf %43 : vector<16x16xf32>
    %45 = arith.mulf %44, %13 : vector<16x16xf32>
    %46 = vector.shape_cast %45 : vector<16x16xf32> to vector<1x16x16xf32>
    %cst_25 = arith.constant dense<0.000000e+00> : vector<1xf32>
    %47 = vector.multi_reduction <add>, %46, %cst_25 [1, 2] : vector<1x16x16xf32> to vector<1xf32>
    %48 = vector.shape_cast %47 : vector<1xf32> to vector<1x1x1xf32>
    %49 = vector.extract %48[0, 0, 0] : f32 from vector<1x1x1xf32>
    %50 = tpu.iota {dimensions = array<i32: 1>} : vector<8x128xi32>
    %cst_26 = arith.constant 0.000000e+00 : f32
    %51 = vector.broadcast %cst_26 : f32 to vector<8x128xf32>
    %c0_i32 = arith.constant 0 : i32
    %52 = vector.broadcast %c0_i32 : i32 to vector<8x128xi32>
    %53 = arith.cmpi eq, %50, %52 : vector<8x128xi32>
    %54 = vector.broadcast %19 : f32 to vector<8x128xf32>
    %55 = arith.select %53, %54, %51 : vector<8x128xi1>, vector<8x128xf32>
    %c1_i32 = arith.constant 1 : i32
    %56 = vector.broadcast %c1_i32 : i32 to vector<8x128xi32>
    %57 = arith.cmpi eq, %50, %56 : vector<8x128xi32>
    %58 = vector.broadcast %24 : f32 to vector<8x128xf32>
    %59 = arith.select %57, %58, %55 : vector<8x128xi1>, vector<8x128xf32>
    %c2_i32 = arith.constant 2 : i32
    %60 = vector.broadcast %c2_i32 : i32 to vector<8x128xi32>
    %61 = arith.cmpi eq, %50, %60 : vector<8x128xi32>
    %62 = vector.broadcast %28 : f32 to vector<8x128xf32>
    %63 = arith.select %61, %62, %59 : vector<8x128xi1>, vector<8x128xf32>
    %c3_i32 = arith.constant 3 : i32
    %64 = vector.broadcast %c3_i32 : i32 to vector<8x128xi32>
    %65 = arith.cmpi eq, %50, %64 : vector<8x128xi32>
    %66 = vector.broadcast %33 : f32 to vector<8x128xf32>
    %67 = arith.select %65, %66, %63 : vector<8x128xi1>, vector<8x128xf32>
    %c4_i32 = arith.constant 4 : i32
    %68 = vector.broadcast %c4_i32 : i32 to vector<8x128xi32>
    %69 = arith.cmpi eq, %50, %68 : vector<8x128xi32>
    %70 = vector.broadcast %38 : f32 to vector<8x128xf32>
    %71 = arith.select %69, %70, %67 : vector<8x128xi1>, vector<8x128xf32>
    %c5_i32 = arith.constant 5 : i32
    %72 = vector.broadcast %c5_i32 : i32 to vector<8x128xi32>
    %73 = arith.cmpi eq, %50, %72 : vector<8x128xi32>
    %74 = vector.broadcast %42 : f32 to vector<8x128xf32>
    %75 = arith.select %73, %74, %71 : vector<8x128xi1>, vector<8x128xf32>
    %c6_i32 = arith.constant 6 : i32
    %76 = vector.broadcast %c6_i32 : i32 to vector<8x128xi32>
    %77 = arith.cmpi eq, %50, %76 : vector<8x128xi32>
    %78 = vector.broadcast %49 : f32 to vector<8x128xf32>
    %79 = arith.select %77, %78, %75 : vector<8x128xi1>, vector<8x128xf32>
    %c0_27 = arith.constant 0 : index
    %c0_28 = arith.constant 0 : index
    %c0_29 = arith.constant 0 : index
    %c0_30 = arith.constant 0 : index
    %80 = vector.load %arg9[%c0_27, %c0_28, %c0_29, %c0_30] : memref<1x1x8x128xf32, #tpu.memory_space<vmem>>, vector<1x1x8x128xf32>
    %81 = vector.shape_cast %80 : vector<1x1x8x128xf32> to vector<8x128xf32>
    %82 = vector.shape_cast %79 : vector<8x128xf32> to vector<1x1x8x128xf32>
    tpu.vector_store %arg9[%c0_27, %c0_28, %c0_29, %c0_30], %82 {strides = array<i32>} : memref<1x1x8x128xf32, #tpu.memory_space<vmem>>, vector<1x1x8x128xf32>,
    return
  }
  func.func @transform_0(%arg0: i32, %arg1: i32) -> (i32, i32, i32) {
    %c0_i32 = arith.constant 0 : i32
    %c0_i32_0 = arith.constant 0 : i32
    return %arg0, %arg1, %c0_i32 : i32, i32, i32
  }
  func.func @transform_1(%arg0: i32, %arg1: i32) -> (i32, i32, i32) {
    %c0_i32 = arith.constant 0 : i32
    %c0_i32_0 = arith.constant 0 : i32
    return %arg0, %arg1, %c0_i32 : i32, i32, i32
  }
  func.func @transform_2(%arg0: i32, %arg1: i32) -> (i32, i32, i32) {
    %c0_i32 = arith.constant 0 : i32
    %c0_i32_0 = arith.constant 0 : i32
    return %arg0, %arg1, %c0_i32 : i32, i32, i32
  }
  func.func @transform_3(%arg0: i32, %arg1: i32) -> (i32, i32, i32) {
    %c0_i32 = arith.constant 0 : i32
    %c0_i32_0 = arith.constant 0 : i32
    return %arg0, %arg1, %c0_i32 : i32, i32, i32
  }
  func.func @transform_4(%arg0: i32, %arg1: i32) -> (i32, i32, i32) {
    %c0_i32 = arith.constant 0 : i32
    %c0_i32_0 = arith.constant 0 : i32
    return %arg0, %arg1, %c0_i32 : i32, i32, i32
  }
  func.func @transform_5(%arg0: i32, %arg1: i32) -> (i32, i32, i32) {
    %c0_i32 = arith.constant 0 : i32
    %c0_i32_0 = arith.constant 0 : i32
    return %arg0, %arg1, %c0_i32 : i32, i32, i32
  }
  func.func @transform_6(%arg0: i32, %arg1: i32) -> (i32, i32, i32) {
    %c0_i32 = arith.constant 0 : i32
    %c0_i32_0 = arith.constant 0 : i32
    return %arg0, %arg1, %c0_i32 : i32, i32, i32
  }
  func.func @transform_7(%arg0: i32, %arg1: i32) -> (i32, i32, i32, i32) {
    %c0_i32 = arith.constant 0 : i32
    %c0_i32_0 = arith.constant 0 : i32
    %c0_i32_1 = arith.constant 0 : i32
    return %arg0, %arg1, %c0_i32, %c0_i32_0 : i32, i32, i32, i32
  }
}

</mosaic_0001>

<llo_original>
// kernel: _l1_dice_loss_impl.1
$region0: #{_l1_dice_loss_impl.1}
  #allocation0 [shape = 'u32[]', space=smem, size = 0x4, offset = 0x4, fixed_abs, tag = 'smem constant byte address 0x4 - core index']
  #allocation1 [shape = 'u32[144,128]{1,0:T(1,128)}', space=vmem, size = 0x12000, scoped, tag = 'internal scratch']
  %s0 = inlined_call_operand.hbm [shape: f32[2,16,16], index: 0, kind: input, shape index: {}]
  %s1 = inlined_call_operand.hbm [shape: f32[2,16,16], index: 1, kind: input, shape index: {}]
  %s2 = inlined_call_operand.hbm [shape: f32[2,16,16], index: 2, kind: input, shape index: {}]
  %s3 = inlined_call_operand.hbm [shape: f32[2,16,16], index: 3, kind: input, shape index: {}]
  %s4 = inlined_call_operand.hbm [shape: f32[2,16,16], index: 4, kind: input, shape index: {}]
  %s5 = inlined_call_operand.hbm [shape: f32[2,16,16], index: 5, kind: input, shape index: {}]
  %s6 = inlined_call_operand.hbm [shape: f32[2,16,16], index: 6, kind: input, shape index: {}]
  %s7 = inlined_call_operand.vmem [shape: f32[2,1,8,128], index: 7, kind: output, shape index: {}]
  %s8 = sld [smem:[#allocation0]]
  $region89: #{_l1_dice_loss_impl.1} parent=0
    _
  %s10 = ssub.s32 1, %s8
  %s11 = scalar_select 0, %s10, %s8
  $region1: #{_l1_dice_loss_impl.1} parent=0
    #allocation2 [shape = 'u8[16384]{0}', space=vmem, size = 0x4000, scoped, tag = 'input window, operand 0']
    #allocation3 [shape = 's32[2]{0}', space=sflag, size = 0x8, scoped, tag = 'scoped memory for _l1_dice_loss_impl.1']
    #allocation4 [shape = 'u8[16384]{0}', space=vmem, size = 0x4000, scoped, tag = 'input window, operand 1']
    #allocation5 [shape = 's32[2]{0}', space=sflag, size = 0x8, scoped, tag = 'scoped memory for _l1_dice_loss_impl.1']
    #allocation6 [shape = 'u8[16384]{0}', space=vmem, size = 0x4000, scoped, tag = 'input window, operand 2']
    #allocation7 [shape = 'u8[16384]{0}', space=vmem, size = 0x4000, scoped, tag = 'input window, operand 3']
    #allocation8 [shape = 's32[2]{0}', space=sflag, size = 0x8, scoped, tag = 'scoped memory for _l1_dice_loss_impl.1']
    #allocation9 [shape = 'u8[16384]{0}', space=vmem, size = 0x4000, scoped, tag = 'input window, operand 4']
    #allocation10 [shape = 'u8[16384]{0}', space=vmem, size = 0x4000, scoped, tag = 'input window, operand 5']
    #allocation11 [shape = 's32[2]{0}', space=sflag, size = 0x8, scoped, tag = 'scoped memory for _l1_dice_loss_impl.1']
    #allocation12 [shape = 'u8[16384]{0}', space=vmem, size = 0x4000, scoped, tag = 'input window, operand 6']
    %12 = vsyncpa [#allocation3], 0
    %s13 = scalar_lea.sflag [#allocation3], 1
    %14 = vsyncpa %s13, 0
    %15 = vsyncpa [#allocation5], 0
    %s16 = scalar_lea.sflag [#allocation5], 1
    %17 = vsyncpa %s16, 0
    %18 = vsyncpa [#allocation8], 0
    %s19 = scalar_lea.sflag [#allocation8], 1
    %20 = vsyncpa %s19, 0
    %21 = vsyncpa [#allocation11], 0
    %s22 = scalar_lea.sflag [#allocation11], 1
    %23 = vsyncpa %s22, 0
    loop: start=0, step=1, limit=4
    $region2: #{_l1_dice_loss_impl.1} parent=1 // loop_pre_header
      _
    $region3: #{_l1_dice_loss_impl.1} parent=1 // loop_header
      %s25 = sphi 0, %s29
      %p26 = scmp.ge.s32.totalorder %s25, 4
      %s32 = sphi 0, %s44
      %s33 = sphi 0, %s40
      %s34 = sphi 0, %s32
      %s35 = sphi 0, %s33
      %s36 = sphi 0, %s34
      %s37 = sphi 0, %s35
      %s49 = sphi 0, %s51
      %s52 = sphi 0, %s49
      %s53 = sphi 0, %s52
      %s69 = sphi 0, %s53
      %s77 = sphi 0, %s79
      %s80 = sphi 0, %s77
      %s81 = sphi 0, %s80
      %s97 = sphi 0, %s81
      %s105 = sphi 0, %s107
      %s108 = sphi 0, %s105
      %s109 = sphi 0, %s108
      %s125 = sphi 0, %s109
      %s133 = sphi 0, %s135
      %s136 = sphi 0, %s133
      %s137 = sphi 0, %s136
      %s153 = sphi 0, %s137
      %s161 = sphi 0, %s163
      %s164 = sphi 0, %s161
      %s165 = sphi 0, %s164
      %s181 = sphi 0, %s165
      %s189 = sphi 0, %s191
      %s192 = sphi 0, %s189
      %s193 = sphi 0, %s192
      %s209 = sphi 0, %s193
      %s217 = sphi 0, %s219
      %s220 = sphi 0, %s217
      %s221 = sphi 0, %s220
      %s237 = sphi 0, %s221
      %s245 = sphi 0, %s247
      %s248 = sphi 0, %s245
      %s249 = sphi 0, %s248
      %s265 = sphi 0, %s249
    $region4: #{_l1_dice_loss_impl.1} parent=1 // loop_header_branch
      %28 = sbr.rel (%p26) target = $region8
    $region5: #{_l1_dice_loss_impl.1} parent=1 // loop_body
      %s30 = ssub.s32 %s25, 1
      %s31 = ssub.s32 %s25, 2
      %s38 = sadd.s32 1, %s33
      %p39 = scmp.ge.s32.totalorder %s38, 1
      %s40 = scalar_select %p39, 0, %s38
      %s41 = sadd.s32 1, %s32
      %s42 = scalar_select %p39, %s41, %s32
      %p43 = scmp.ge.s32.totalorder %s42, 2
      %s44 = scalar_select %p43, 0, %s42
      %s45 = ssub.s32 %s32, %s44
      %s46 = ssub.s32 %s33, %s40
      %s47 = sor.u32 %s45, %s46
      %p48 = scmp.eq.s32.totalorder %s47, 0
      %s50 = sadd.s32 %s49, 1
      %s51 = scalar_select %p48, %s49, %s50
      %p54 = pneg %p48
      %p55 = scmp.eq.s32.totalorder %s25, 1
      %p56 = por %p54, %p55
      %p57 = scmp.ne.s32.totalorder %s49, %s52
      %p58 = scmp.eq.s32.totalorder %s25, 0
      %p59 = por %p57, %p58
      %p60 = scmp.ne.s32.totalorder %s49, %s52
      %p61 = scmp.eq.s32.totalorder %s30, 1
      %p62 = por %p60, %p61
      %p63 = scmp.ne.s32.totalorder %s52, %s53
      %p64 = scmp.eq.s32.totalorder %s30, 0
      %p65 = por %p63, %p64
      %p66 = scmp.ne.s32.totalorder %s52, %s53
      %p67 = scmp.eq.s32.totalorder %s31, 1
      %p68 = por %p66, %p67
      %p70 = scmp.ne.s32.totalorder %s53, %s69
      %p71 = scmp.eq.s32.totalorder %s31, 0
      %p72 = por %p70, %p71
      %s73 = ssub.s32 %s32, %s44
      %s74 = ssub.s32 %s33, %s40
      %s75 = sor.u32 %s73, %s74
      %p76 = scmp.eq.s32.totalorder %s75, 0
      %s78 = sadd.s32 %s77, 1
      %s79 = scalar_select %p76, %s77, %s78
      %p82 = pneg %p76
      %p83 = scmp.eq.s32.totalorder %s25, 1
      %p84 = por %p82, %p83
      %p85 = scmp.ne.s32.totalorder %s77, %s80
      %p86 = scmp.eq.s32.totalorder %s25, 0
      %p87 = por %p85, %p86
      %p88 = scmp.ne.s32.totalorder %s77, %s80
      %p89 = scmp.eq.s32.totalorder %s30, 1
      %p90 = por %p88, %p89
      %p91 = scmp.ne.s32.totalorder %s80, %s81
      %p92 = scmp.eq.s32.totalorder %s30, 0
      %p93 = por %p91, %p92
      %p94 = scmp.ne.s32.totalorder %s80, %s81
      %p95 = scmp.eq.s32.totalorder %s31, 1
      %p96 = por %p94, %p95
      %p98 = scmp.ne.s32.totalorder %s81, %s97
      %p99 = scmp.eq.s32.totalorder %s31, 0
      %p100 = por %p98, %p99
      %s101 = ssub.s32 %s32, %s44
      %s102 = ssub.s32 %s33, %s40
      %s103 = sor.u32 %s101, %s102
      %p104 = scmp.eq.s32.totalorder %s103, 0
      %s106 = sadd.s32 %s105, 1
      %s107 = scalar_select %p104, %s105, %s106
      %p110 = pneg %p104
      %p111 = scmp.eq.s32.totalorder %s25, 1
      %p112 = por %p110, %p111
      %p113 = scmp.ne.s32.totalorder %s105, %s108
      %p114 = scmp.eq.s32.totalorder %s25, 0
      %p115 = por %p113, %p114
      %p116 = scmp.ne.s32.totalorder %s105, %s108
      %p117 = scmp.eq.s32.totalorder %s30, 1
      %p118 = por %p116, %p117
      %p119 = scmp.ne.s32.totalorder %s108, %s109
      %p120 = scmp.eq.s32.totalorder %s30, 0
      %p121 = por %p119, %p120
      %p122 = scmp.ne.s32.totalorder %s108, %s109
      %p123 = scmp.eq.s32.totalorder %s31, 1
      %p124 = por %p122, %p123
      %p126 = scmp.ne.s32.totalorder %s109, %s125
      %p127 = scmp.eq.s32.totalorder %s31, 0
      %p128 = por %p126, %p127
      %s129 = ssub.s32 %s32, %s44
      %s130 = ssub.s32 %s33, %s40
      %s131 = sor.u32 %s129, %s130
      %p132 = scmp.eq.s32.totalorder %s131, 0
      %s134 = sadd.s32 %s133, 1
      %s135 = scalar_select %p132, %s133, %s134
      %p138 = pneg %p132
      %p139 = scmp.eq.s32.totalorder %s25, 1
      %p140 = por %p138, %p139
      %p141 = scmp.ne.s32.totalorder %s133, %s136
      %p142 = scmp.eq.s32.totalorder %s25, 0
      %p143 = por %p141, %p142
      %p144 = scmp.ne.s32.totalorder %s133, %s136
      %p145 = scmp.eq.s32.totalorder %s30, 1
      %p146 = por %p144, %p145
      %p147 = scmp.ne.s32.totalorder %s136, %s137
      %p148 = scmp.eq.s32.totalorder %s30, 0
      %p149 = por %p147, %p148
      %p150 = scmp.ne.s32.totalorder %s136, %s137
      %p151 = scmp.eq.s32.totalorder %s31, 1
      %p152 = por %p150, %p151
      %p154 = scmp.ne.s32.totalorder %s137, %s153
      %p155 = scmp.eq.s32.totalorder %s31, 0
      %p156 = por %p154, %p155
      %s157 = ssub.s32 %s32, %s44
      %s158 = ssub.s32 %s33, %s40
      %s159 = sor.u32 %s157, %s158
      %p160 = scmp.eq.s32.totalorder %s159, 0
      %s162 = sadd.s32 %s161, 1
      %s163 = scalar_select %p160, %s161, %s162
      %p166 = pneg %p160
      %p167 = scmp.eq.s32.totalorder %s25, 1
      %p168 = por %p166, %p167
      %p169 = scmp.ne.s32.totalorder %s161, %s164
      %p170 = scmp.eq.s32.totalorder %s25, 0
      %p171 = por %p169, %p170
      %p172 = scmp.ne.s32.totalorder %s161, %s164
      %p173 = scmp.eq.s32.totalorder %s30, 1
      %p174 = por %p172, %p173
      %p175 = scmp.ne.s32.totalorder %s164, %s165
      %p176 = scmp.eq.s32.totalorder %s30, 0
      %p177 = por %p175, %p176
      %p178 = scmp.ne.s32.totalorder %s164, %s165
      %p179 = scmp.eq.s32.totalorder %s31, 1
      %p180 = por %p178, %p179
      %p182 = scmp.ne.s32.totalorder %s165, %s181
      %p183 = scmp.eq.s32.totalorder %s31, 0
      %p184 = por %p182, %p183
      %s185 = ssub.s32 %s32, %s44
      %s186 = ssub.s32 %s33, %s40
      %s187 = sor.u32 %s185, %s186
      %p188 = scmp.eq.s32.totalorder %s187, 0
      %s190 = sadd.s32 %s189, 1
      %s191 = scalar_select %p188, %s189, %s190
      %p194 = pneg %p188
      %p195 = scmp.eq.s32.totalorder %s25, 1
      %p196 = por %p194, %p195
      %p197 = scmp.ne.s32.totalorder %s189, %s192
      %p198 = scmp.eq.s32.totalorder %s25, 0
      %p199 = por %p197, %p198
      %p200 = scmp.ne.s32.totalorder %s189, %s192
      %p201 = scmp.eq.s32.totalorder %s30, 1
      %p202 = por %p200, %p201
      %p203 = scmp.ne.s32.totalorder %s192, %s193
      %p204 = scmp.eq.s32.totalorder %s30, 0
      %p205 = por %p203, %p204
      %p206 = scmp.ne.s32.totalorder %s192, %s193
      %p207 = scmp.eq.s32.totalorder %s31, 1
      %p208 = por %p206, %p207
      %p210 = scmp.ne.s32.totalorder %s193, %s209
      %p211 = scmp.eq.s32.totalorder %s31, 0
      %p212 = por %p210, %p211
      %s213 = ssub.s32 %s32, %s44
      %s214 = ssub.s32 %s33, %s40
      %s215 = sor.u32 %s213, %s214
      %p216 = scmp.eq.s32.totalorder %s215, 0
      %s218 = sadd.s32 %s217, 1
      %s219 = scalar_select %p216, %s217, %s218
      %p222 = pneg %p216
      %p223 = scmp.eq.s32.totalorder %s25, 1
      %p224 = por %p222, %p223
      %p225 = scmp.ne.s32.totalorder %s217, %s220
      %p226 = scmp.eq.s32.totalorder %s25, 0
      %p227 = por %p225, %p226
      %p228 = scmp.ne.s32.totalorder %s217, %s220
      %p229 = scmp.eq.s32.totalorder %s30, 1
      %p230 = por %p228, %p229
      %p231 = scmp.ne.s32.totalorder %s220, %s221
      %p232 = scmp.eq.s32.totalorder %s30, 0
      %p233 = por %p231, %p232
      %p234 = scmp.ne.s32.totalorder %s220, %s221
      %p235 = scmp.eq.s32.totalorder %s31, 1
      %p236 = por %p234, %p235
      %p238 = scmp.ne.s32.totalorder %s221, %s237
      %p239 = scmp.eq.s32.totalorder %s31, 0
      %p240 = por %p238, %p239
      %s241 = ssub.s32 %s32, %s44
      %s242 = ssub.s32 %s33, %s40
      %s243 = sor.u32 %s241, %s242
      %p244 = scmp.eq.s32.totalorder %s243, 0
      %s246 = sadd.s32 %s245, 1
      %s247 = scalar_select %p244, %s245, %s246
      %p250 = pneg %p244
      %p251 = scmp.eq.s32.totalorder %s25, 1
      %p252 = por %p250, %p251
      %p253 = scmp.ne.s32.totalorder %s245, %s248
      %p254 = scmp.eq.s32.totalorder %s25, 0
      %p255 = por %p253, %p254
      %p256 = scmp.ne.s32.totalorder %s245, %s248
      %p257 = scmp.eq.s32.totalorder %s30, 1
      %p258 = por %p256, %p257
      %p259 = scmp.ne.s32.totalorder %s248, %s249
      %p260 = scmp.eq.s32.totalorder %s30, 0
      %p261 = por %p259, %p260
      %p262 = scmp.ne.s32.totalorder %s248, %s249
      %p263 = scmp.eq.s32.totalorder %s31, 1
      %p264 = por %p262, %p263
      %p266 = scmp.ne.s32.totalorder %s249, %s265
      %p267 = scmp.eq.s32.totalorder %s31, 0
      %p268 = por %p266, %p267
      %p269 = scmp.le.s32.totalorder 1, %s25
      %p270 = scmp.lt.s32.totalorder %s25, 3
      %p271 = pnand %p269, %p270
      %p272 = pneg %p271
      // Predicated region
      $region9: #{_l1_dice_loss_impl.1} parent=5 // pred_check
        _
      $region10: #{_l1_dice_loss_impl.1} parent=5 // pred_check_branch
        %274 = sbr.rel (%p271) target = $region12
      $region11: #{_l1_dice_loss_impl.1} parent=5 // pred_region
        %s275 = ssub.s32 %s25, 1
      $region12: #{_l1_dice_loss_impl.1} parent=5 // pred_fallthru
        _
      %p276 = scmp.lt.s32.totalorder %s25, 2
      // Predicated region
      $region13: #{_l1_dice_loss_impl.1} parent=5 // pred_check
        %p277 = pneg %p276
      $region14: #{_l1_dice_loss_impl.1} parent=5 // pred_check_branch
        %279 = sbr.rel (%p277) target = $region16
      $region15: #{_l1_dice_loss_impl.1} parent=5 // pred_region
        // Predicated region
        $region17: #{_l1_dice_loss_impl.1} parent=15 // pred_check
          %p280 = pneg %p59
        $region18: #{_l1_dice_loss_impl.1} parent=15 // pred_check_branch
          %282 = sbr.rel (%p280) target = $region20
        $region19: #{_l1_dice_loss_impl.1} parent=15 // pred_region
          %s283 = sand.u32 %s49, 1
          %s284 = scalar_lea.sflag [#allocation3], %s283
          %s285 = sand.u32 %s49, 1
          %s286 = smul.addr %s285, 16
          %s287 = scalar_lea.vmem [#allocation2], %s286
          %s288 = smul.u32 2, %s33
          %s290 = ssub.s32 256, 256
          %291 = vsyncadd %s284, %s290
          %s292 = smul.addr %s32, 2
          %s293 = sadd.s32 %s288, %s292
          %s294 = smul.addr %s293, 128
          %s295 = scalar_lea.hbm %s0, %s294
          %s296 = sshll.u32 %s287, 4
          %s297 = int_to_ptr.vmem [resolvable:$true] %s296
          %302 = dma.hbm_to_vmem [thread:$0]  %s295, 256, %s297, %s284, 128, 128, 8
        $region20: #{_l1_dice_loss_impl.1} parent=15 // pred_fallthru
          _
        // Predicated region
        $region21: #{_l1_dice_loss_impl.1} parent=15 // pred_check
          %p303 = pneg %p87
        $region22: #{_l1_dice_loss_impl.1} parent=15 // pred_check_branch
          %305 = sbr.rel (%p303) target = $region24
        $region23: #{_l1_dice_loss_impl.1} parent=15 // pred_region
          %s306 = sand.u32 %s25, 1
          %s307 = scalar_lea.sflag [#allocation5], %s306
          %s308 = sand.u32 %s77, 1
          %s309 = smul.addr %s308, 16
          %s310 = scalar_lea.vmem [#allocation4], %s309
          %s311 = smul.u32 2, %s33
          %s313 = ssub.s32 256, 256
          %314 = vsyncadd %s307, %s313
          %s315 = smul.addr %s32, 2
          %s316 = sadd.s32 %s311, %s315
          %s317 = smul.addr %s316, 128
          %s318 = scalar_lea.hbm %s1, %s317
          %s319 = sshll.u32 %s310, 4
          %s320 = int_to_ptr.vmem [resolvable:$true] %s319
          %325 = dma.hbm_to_vmem [thread:$0]  %s318, 256, %s320, %s307, 128, 128, 8
        $region24: #{_l1_dice_loss_impl.1} parent=15 // pred_fallthru
          _
        // Predicated region
        $region25: #{_l1_dice_loss_impl.1} parent=15 // pred_check
          %p326 = pneg %p115
        $region26: #{_l1_dice_loss_impl.1} parent=15 // pred_check_branch
          %328 = sbr.rel (%p326) target = $region28
        $region27: #{_l1_dice_loss_impl.1} parent=15 // pred_region
          %s329 = sand.u32 %s25, 1
          %s330 = scalar_lea.sflag [#allocation5], %s329
          %s331 = sand.u32 %s105, 1
          %s332 = smul.addr %s331, 16
          %s333 = scalar_lea.vmem [#allocation6], %s332
          %s334 = smul.u32 2, %s33
          %s336 = ssub.s32 256, 256
          %337 = vsyncadd %s330, %s336
          %s338 = smul.addr %s32, 2
          %s339 = sadd.s32 %s334, %s338
          %s340 = smul.addr %s339, 128
          %s341 = scalar_lea.hbm %s2, %s340
          %s342 = sshll.u32 %s333, 4
          %s343 = int_to_ptr.vmem [resolvable:$true] %s342
          %348 = dma.hbm_to_vmem [thread:$0]  %s341, 256, %s343, %s330, 128, 128, 8
        $region28: #{_l1_dice_loss_impl.1} parent=15 // pred_fallthru
          _
        // Predicated region
        $region29: #{_l1_dice_loss_impl.1} parent=15 // pred_check
          %p349 = pneg %p143
        $region30: #{_l1_dice_loss_impl.1} parent=15 // pred_check_branch
          %351 = sbr.rel (%p349) target = $region32
        $region31: #{_l1_dice_loss_impl.1} parent=15 // pred_region
          %s352 = sand.u32 %s25, 1
          %s353 = scalar_lea.sflag [#allocation8], %s352
          %s354 = sand.u32 %s133, 1
          %s355 = smul.addr %s354, 16
          %s356 = scalar_lea.vmem [#allocation7], %s355
          %s357 = smul.u32 2, %s33
          %s359 = ssub.s32 256, 256
          %360 = vsyncadd %s353, %s359
          %s361 = smul.addr %s32, 2
          %s362 = sadd.s32 %s357, %s361
          %s363 = smul.addr %s362, 128
          %s364 = scalar_lea.hbm %s3, %s363
          %s365 = sshll.u32 %s356, 4
          %s366 = int_to_ptr.vmem [resolvable:$true] %s365
          %371 = dma.hbm_to_vmem [thread:$0]  %s364, 256, %s366, %s353, 128, 128, 8
        $region32: #{_l1_dice_loss_impl.1} parent=15 // pred_fallthru
          _
        // Predicated region
        $region33: #{_l1_dice_loss_impl.1} parent=15 // pred_check
          %p372 = pneg %p171
        $region34: #{_l1_dice_loss_impl.1} parent=15 // pred_check_branch
          %374 = sbr.rel (%p372) target = $region36
        $region35: #{_l1_dice_loss_impl.1} parent=15 // pred_region
          %s375 = sand.u32 %s25, 1
          %s376 = scalar_lea.sflag [#allocation8], %s375
          %s377 = sand.u32 %s161, 1
          %s378 = smul.addr %s377, 16
          %s379 = scalar_lea.vmem [#allocation9], %s378
          %s380 = smul.u32 2, %s33
          %s382 = ssub.s32 256, 256
          %383 = vsyncadd %s376, %s382
          %s384 = smul.addr %s32, 2
          %s385 = sadd.s32 %s380, %s384
          %s386 = smul.addr %s385, 128
          %s387 = scalar_lea.hbm %s4, %s386
          %s388 = sshll.u32 %s379, 4
          %s389 = int_to_ptr.vmem [resolvable:$true] %s388
          %394 = dma.hbm_to_vmem [thread:$0]  %s387, 256, %s389, %s376, 128, 128, 8
        $region36: #{_l1_dice_loss_impl.1} parent=15 // pred_fallthru
          _
        // Predicated region
        $region37: #{_l1_dice_loss_impl.1} parent=15 // pred_check
          %p395 = pneg %p199
        $region38: #{_l1_dice_loss_impl.1} parent=15 // pred_check_branch
          %397 = sbr.rel (%p395) target = $region40
        $region39: #{_l1_dice_loss_impl.1} parent=15 // pred_region
          %s398 = sand.u32 %s25, 1
          %s399 = scalar_lea.sflag [#allocation11], %s398
          %s400 = sand.u32 %s189, 1
          %s401 = smul.addr %s400, 16
          %s402 = scalar_lea.vmem [#allocation10], %s401
          %s403 = smul.u32 2, %s33
          %s405 = ssub.s32 256, 256
          %406 = vsyncadd %s399, %s405
          %s407 = smul.addr %s32, 2
          %s408 = sadd.s32 %s403, %s407
          %s409 = smul.addr %s408, 128
          %s410 = scalar_lea.hbm %s5, %s409
          %s411 = sshll.u32 %s402, 4
          %s412 = int_to_ptr.vmem [resolvable:$true] %s411
          %417 = dma.hbm_to_vmem [thread:$0]  %s410, 256, %s412, %s399, 128, 128, 8
        $region40: #{_l1_dice_loss_impl.1} parent=15 // pred_fallthru
          _
        // Predicated region
        $region41: #{_l1_dice_loss_impl.1} parent=15 // pred_check
          %p418 = pneg %p227
        $region42: #{_l1_dice_loss_impl.1} parent=15 // pred_check_branch
          %420 = sbr.rel (%p418) target = $region44
        $region43: #{_l1_dice_loss_impl.1} parent=15 // pred_region
          %s421 = sand.u32 %s25, 1
          %s422 = scalar_lea.sflag [#allocation11], %s421
          %s423 = sand.u32 %s217, 1
          %s424 = smul.addr %s423, 16
          %s425 = scalar_lea.vmem [#allocation12], %s424
          %s426 = smul.u32 2, %s33
          %s428 = ssub.s32 256, 256
          %429 = vsyncadd %s422, %s428
          %s430 = smul.addr %s32, 2
          %s431 = sadd.s32 %s426, %s430
          %s432 = smul.addr %s431, 128
          %s433 = scalar_lea.hbm %s6, %s432
          %s434 = sshll.u32 %s425, 4
          %s435 = int_to_ptr.vmem [resolvable:$true] %s434
          %440 = dma.hbm_to_vmem [thread:$0]  %s433, 256, %s435, %s422, 128, 128, 8
        $region44: #{_l1_dice_loss_impl.1} parent=15 // pred_fallthru
          _
      $region16: #{_l1_dice_loss_impl.1} parent=5 // pred_fallthru
        _
      %p441 = scmp.le.s32.totalorder 1, %s25
      %p442 = scmp.lt.s32.totalorder %s25, 3
      %p443 = pnand %p441, %p442
      %p444 = pneg %p443
      // Predicated region
      $region45: #{_l1_dice_loss_impl.1} parent=5 // pred_check
        _
      $region46: #{_l1_dice_loss_impl.1} parent=5 // pred_check_branch
        %446 = sbr.rel (%p443) target = $region48
      $region47: #{_l1_dice_loss_impl.1} parent=5 // pred_region
        %s447 = ssub.s32 %s25, 1
        %s448 = sand.u32 %s52, 1
        %s449 = scalar_lea.sflag [#allocation3], %s448
        %s450 = sand.u32 %s52, 1
        %s451 = smul.addr %s450, 16
        %s452 = scalar_lea.vmem [#allocation2], %s451
        // Predicated region
        $region49: #{_l1_dice_loss_impl.1} parent=47 // pred_check
          %p453 = pneg %p65
        $region50: #{_l1_dice_loss_impl.1} parent=47 // pred_check_branch
          %455 = sbr.rel (%p453) target = $region52
        $region51: #{_l1_dice_loss_impl.1} parent=47 // pred_region
          %456 = dma.done %s449, 256
        $region52: #{_l1_dice_loss_impl.1} parent=47 // pred_fallthru
          _
        %s457 = sand.u32 %s30, 1
        %s458 = scalar_lea.sflag [#allocation5], %s457
        %s459 = sand.u32 %s80, 1
        %s460 = smul.addr %s459, 16
        %s461 = scalar_lea.vmem [#allocation4], %s460
        // Predicated region
        $region53: #{_l1_dice_loss_impl.1} parent=47 // pred_check
          %p462 = pneg %p93
        $region54: #{_l1_dice_loss_impl.1} parent=47 // pred_check_branch
          %464 = sbr.rel (%p462) target = $region56
        $region55: #{_l1_dice_loss_impl.1} parent=47 // pred_region
          %465 = dma.done %s458, 256
        $region56: #{_l1_dice_loss_impl.1} parent=47 // pred_fallthru
          _
        %s466 = sand.u32 %s30, 1
        %s467 = scalar_lea.sflag [#allocation5], %s466
        %s468 = sand.u32 %s108, 1
        %s469 = smul.addr %s468, 16
        %s470 = scalar_lea.vmem [#allocation6], %s469
        // Predicated region
        $region57: #{_l1_dice_loss_impl.1} parent=47 // pred_check
          %p471 = pneg %p121
        $region58: #{_l1_dice_loss_impl.1} parent=47 // pred_check_branch
          %473 = sbr.rel (%p471) target = $region60
        $region59: #{_l1_dice_loss_impl.1} parent=47 // pred_region
          %474 = dma.done %s467, 256
        $region60: #{_l1_dice_loss_impl.1} parent=47 // pred_fallthru
          _
        %s475 = sand.u32 %s30, 1
        %s476 = scalar_lea.sflag [#allocation8], %s475
        %s477 = sand.u32 %s136, 1
        %s478 = smul.addr %s477, 16
        %s479 = scalar_lea.vmem [#allocation7], %s478
        // Predicated region
        $region61: #{_l1_dice_loss_impl.1} parent=47 // pred_check
          %p480 = pneg %p149
        $region62: #{_l1_dice_loss_impl.1} parent=47 // pred_check_branch
          %482 = sbr.rel (%p480) target = $region64
        $region63: #{_l1_dice_loss_impl.1} parent=47 // pred_region
          %483 = dma.done %s476, 256
        $region64: #{_l1_dice_loss_impl.1} parent=47 // pred_fallthru
          _
        %s484 = sand.u32 %s30, 1
        %s485 = scalar_lea.sflag [#allocation8], %s484
        %s486 = sand.u32 %s164, 1
        %s487 = smul.addr %s486, 16
        %s488 = scalar_lea.vmem [#allocation9], %s487
        // Predicated region
        $region65: #{_l1_dice_loss_impl.1} parent=47 // pred_check
          %p489 = pneg %p177
        $region66: #{_l1_dice_loss_impl.1} parent=47 // pred_check_branch
          %491 = sbr.rel (%p489) target = $region68
        $region67: #{_l1_dice_loss_impl.1} parent=47 // pred_region
          %492 = dma.done %s485, 256
        $region68: #{_l1_dice_loss_impl.1} parent=47 // pred_fallthru
          _
        %s493 = sand.u32 %s30, 1
        %s494 = scalar_lea.sflag [#allocation11], %s493
        %s495 = sand.u32 %s192, 1
        %s496 = smul.addr %s495, 16
        %s497 = scalar_lea.vmem [#allocation10], %s496
        // Predicated region
        $region69: #{_l1_dice_loss_impl.1} parent=47 // pred_check
          %p498 = pneg %p205
        $region70: #{_l1_dice_loss_impl.1} parent=47 // pred_check_branch
          %500 = sbr.rel (%p498) target = $region72
        $region71: #{_l1_dice_loss_impl.1} parent=47 // pred_region
          %501 = dma.done %s494, 256
        $region72: #{_l1_dice_loss_impl.1} parent=47 // pred_fallthru
          _
        %s502 = sand.u32 %s30, 1
        %s503 = scalar_lea.sflag [#allocation11], %s502
        %s504 = sand.u32 %s220, 1
        %s505 = smul.addr %s504, 16
        %s506 = scalar_lea.vmem [#allocation12], %s505
        // Predicated region
        $region73: #{_l1_dice_loss_impl.1} parent=47 // pred_check
          %p507 = pneg %p233
        $region74: #{_l1_dice_loss_impl.1} parent=47 // pred_check_branch
          %509 = sbr.rel (%p507) target = $region76
        $region75: #{_l1_dice_loss_impl.1} parent=47 // pred_region
          %510 = dma.done %s503, 256
        $region76: #{_l1_dice_loss_impl.1} parent=47 // pred_fallthru
          _
        %s511 = sand.u32 %s52, 1
        %s512 = scalar_lea.sflag [#allocation3], %s511
        %s513 = sand.u32 %s52, 1
        %s514 = smul.addr %s513, 16
        %s515 = scalar_lea.vmem [#allocation2], %s514
        %p516 = pneg %p65
        %p517 = pneg %p62
        %s518 = sand.u32 %s30, 1
        %s519 = scalar_lea.sflag [#allocation5], %s518
        %s520 = sand.u32 %s80, 1
        %s521 = smul.addr %s520, 16
        %s522 = scalar_lea.vmem [#allocation4], %s521
        %p523 = pneg %p93
        %p524 = pneg %p90
        %s525 = sand.u32 %s30, 1
        %s526 = scalar_lea.sflag [#allocation5], %s525
        %s527 = sand.u32 %s108, 1
        %s528 = smul.addr %s527, 16
        %s529 = scalar_lea.vmem [#allocation6], %s528
        %p530 = pneg %p121
        %p531 = pneg %p118
        %s532 = sand.u32 %s30, 1
        %s533 = scalar_lea.sflag [#allocation8], %s532
        %s534 = sand.u32 %s136, 1
        %s535 = smul.addr %s534, 16
        %s536 = scalar_lea.vmem [#allocation7], %s535
        %p537 = pneg %p149
        %p538 = pneg %p146
        %s539 = sand.u32 %s30, 1
        %s540 = scalar_lea.sflag [#allocation8], %s539
        %s541 = sand.u32 %s164, 1
        %s542 = smul.addr %s541, 16
        %s543 = scalar_lea.vmem [#allocation9], %s542
        %p544 = pneg %p177
        %p545 = pneg %p174
        %s546 = sand.u32 %s30, 1
        %s547 = scalar_lea.sflag [#allocation11], %s546
        %s548 = sand.u32 %s192, 1
        %s549 = smul.addr %s548, 16
        %s550 = scalar_lea.vmem [#allocation10], %s549
        %p551 = pneg %p205
        %p552 = pneg %p202
        %s553 = sand.u32 %s30, 1
        %s554 = scalar_lea.sflag [#allocation11], %s553
        %s555 = sand.u32 %s220, 1
        %s556 = smul.addr %s555, 16
        %s557 = scalar_lea.vmem [#allocation12], %s556
        %p558 = pneg %p233
        %p559 = pneg %p230
        %p560 = pneg %p261
        %p561 = pneg %p258
        %p562 = scmp.lt.s32.totalorder %s34, 1
        %s563 = scalar_select %p562, %s34, 1
        %p564 = scmp.lt.s32.totalorder %s35, 0
        %s565 = scalar_select %p564, %s35, 0
        %s566 = sadd.s32 %s565, %s563
        %s567 = smul.addr %s566, 8
        %s568 = scalar_lea.vmem %s7, %s567
        %s569 = smul.u32 2, %s35
        %s570 = smul.u32 2, %s35
        %s571 = smul.u32 2, %s35
        %s572 = smul.u32 2, %s35
        %s573 = smul.u32 2, %s35
        %s574 = smul.u32 2, %s35
        %s575 = smul.u32 2, %s35
        %p576 = scmp.lt.s32.totalorder %s34, 1
        %s577 = scalar_select %p576, %s34, 1
        %p578 = scmp.lt.s32.totalorder %s35, 0
        %s579 = scalar_select %p578, %s35, 0
        %s580 = sadd.s32 %s579, %s577
        %s581 = smul.addr %s580, 8
        %s582 = scalar_lea.vmem %s7, %s581
        %v583 = vld [vmem:[%s452] sm:$0xff]
        %v584 = vld [vmem:[%s452 + $0x8] sm:$0xff]
        %v585 = vld [vmem:[%s461] sm:$0xff]
        %v586 = vld [vmem:[%s461 + $0x8] sm:$0xff]
        %v587 = vld [vmem:[%s470] sm:$0xff]
        %v588 = vld [vmem:[%s470 + $0x8] sm:$0xff]
        %v589 = vld [vmem:[%s479] sm:$0xff]
        %v590 = vld [vmem:[%s479 + $0x8] sm:$0xff]
        %v591 = vld [vmem:[%s488] sm:$0xff]
        %v592 = vld [vmem:[%s488 + $0x8] sm:$0xff]
        %v593 = vld [vmem:[%s497] sm:$0xff]
        %v594 = vld [vmem:[%s497 + $0x8] sm:$0xff]
        %v595 = vld [vmem:[%s506] sm:$0xff]
        %v596 = vld [vmem:[%s506 + $0x8] sm:$0xff]
        %v597 = vmul.f32 %v591, %v593
        %v598 = vmul.f32 %v592, %v594
        %v599 = vmul.f32 %v583, %v597
        %v600 = vmul.f32 %v584, %v598
        %vm601 = vcmask 130048
        %v602 = vsel %vm601, %v599, 0.0
        %v603 = vsel %vm601, %v600, 0.0
        %v604 = vadd.f32 %v602, %v603
        %605 = vadd.xlane.f32.xlu0 %v604
        %v606 = vpop.xlane.xlu0 %605
        %v607 = vrot.slane %v606, 4
        %v608 = vadd.f32 %v606, %v607
        %v609 = vrot.slane %v608, 2
        %v610 = vadd.f32 %v608, %v609
        %v611 = vrot.slane %v610, 1
        %v612 = vadd.f32 %v610, %v611
        %s613 = vtos %v612
        %v614 = vmul.f32 %v583, %v593
        %v615 = vmul.f32 %v584, %v594
        %v616 = vsel %vm601, %v614, 0.0
        %v617 = vsel %vm601, %v615, 0.0
        %v618 = vadd.f32 %v616, %v617
        %619 = vadd.xlane.f32.xlu0 %v618
        %v620 = vpop.xlane.xlu0 %619
        %v621 = vrot.slane %v620, 4
        %v622 = vadd.f32 %v620, %v621
        %v623 = vrot.slane %v622, 2
        %v624 = vadd.f32 %v622, %v623
        %v625 = vrot.slane %v624, 1
        %v626 = vadd.f32 %v624, %v625
        %s627 = vtos %v626
        %v628 = vsel %vm601, %v597, 0.0
        %v629 = vsel %vm601, %v598, 0.0
        %v630 = vadd.f32 %v628, %v629
        %631 = vadd.xlane.f32.xlu0 %v630
        %v632 = vpop.xlane.xlu0 %631
        %v633 = vrot.slane %v632, 4
        %v634 = vadd.f32 %v632, %v633
        %v635 = vrot.slane %v634, 2
        %v636 = vadd.f32 %v634, %v635
        %v637 = vrot.slane %v636, 1
        %v638 = vadd.f32 %v636, %v637
        %s639 = vtos %v638
        %v640 = vmul.f32 %v585, %v597
        %v641 = vmul.f32 %v586, %v598
        %v642 = vsel %vm601, %v640, 0.0
        %v643 = vsel %vm601, %v641, 0.0
        %v644 = vadd.f32 %v642, %v643
        %645 = vadd.xlane.f32.xlu0 %v644
        %v646 = vpop.xlane.xlu0 %645
        %v647 = vrot.slane %v646, 4
        %v648 = vadd.f32 %v646, %v647
        %v649 = vrot.slane %v648, 2
        %v650 = vadd.f32 %v648, %v649
        %v651 = vrot.slane %v650, 1
        %v652 = vadd.f32 %v650, %v651
        %s653 = vtos %v652
        %v654 = vmul.f32 %v585, %v593
        %v655 = vmul.f32 %v586, %v594
        %v656 = vsel %vm601, %v654, 0.0
        %v657 = vsel %vm601, %v655, 0.0
        %v658 = vadd.f32 %v656, %v657
        %659 = vadd.xlane.f32.xlu0 %v658
        %v660 = vpop.xlane.xlu0 %659
        %v661 = vrot.slane %v660, 4
        %v662 = vadd.f32 %v660, %v661
        %v663 = vrot.slane %v662, 2
        %v664 = vadd.f32 %v662, %v663
        %v665 = vrot.slane %v664, 1
        %v666 = vadd.f32 %v664, %v665
        %s667 = vtos %v666
        %v668 = vsel %vm601, %v595, 0.0
        %v669 = vsel %vm601, %v596, 0.0
        %v670 = vadd.f32 %v668, %v669
        %671 = vadd.xlane.f32.xlu0 %v670
        %v672 = vpop.xlane.xlu0 %671
        %v673 = vrot.slane %v672, 4
        %v674 = vadd.f32 %v672, %v673
        %v675 = vrot.slane %v674, 2
        %v676 = vadd.f32 %v674, %v675
        %v677 = vrot.slane %v676, 1
        %v678 = vadd.f32 %v676, %v677
        %s679 = vtos %v678
        %v680 = vsub.f32 %v587, %v589
        %v681 = vsub.f32 %v588, %v590
        %v682 = vand.u32 2147483647, %v680
        %v683 = vand.u32 2147483647, %v681
        %v684 = vmul.f32 %v682, %v595
        %v685 = vmul.f32 %v683, %v596
        %v686 = vsel %vm601, %v684, 0.0
        %v687 = vsel %vm601, %v685, 0.0
        %v688 = vadd.f32 %v686, %v687
        %689 = vadd.xlane.f32.xlu0 %v688
        %v690 = vpop.xlane.xlu0 %689
        %v691 = vrot.slane %v690, 4
        %v692 = vadd.f32 %v690, %v691
        %v693 = vrot.slane %v692, 2
        %v694 = vadd.f32 %v692, %v693
        %v695 = vrot.slane %v694, 1
        %v696 = vadd.f32 %v694, %v695
        %s697 = vtos %v696
        %v698 = vlaneseq
        %v699 = vand.u32 %v698, 127
        %vm700 = vcmp.eq.s32.totalorder %v699, 0
        %v701 = vstv %s613
        %v702 = vsel %vm700, %v701, 0.0
        %vm703 = vcmp.eq.s32.totalorder %v699, 1
        %v704 = vstv %s627
        %v705 = vsel %vm703, %v704, %v702
        %vm706 = vcmp.eq.s32.totalorder %v699, 2
        %v707 = vstv %s639
        %v708 = vsel %vm706, %v707, %v705
        %vm709 = vcmp.eq.s32.totalorder %v699, 3
        %v710 = vstv %s653
        %v711 = vsel %vm709, %v710, %v708
        %vm712 = vcmp.eq.s32.totalorder %v699, 4
        %v713 = vstv %s667
        %v714 = vsel %vm712, %v713, %v711
        %vm715 = vcmp.eq.s32.totalorder %v699, 5
        %v716 = vstv %s679
        %v717 = vsel %vm715, %v716, %v714
        %vm718 = vcmp.eq.s32.totalorder %v699, 6
        %v719 = vstv %s697
        %v720 = vsel %vm718, %v719, %v717
        %721 = vst [vmem:[%s582] sm:$0xff] %v720
        %p722 = scmp.lt.s32.totalorder %s34, 1
        %s723 = scalar_select %p722, %s34, 1
        %p724 = scmp.lt.s32.totalorder %s35, 0
        %s725 = scalar_select %p724, %s35, 0
        %s726 = sadd.s32 %s725, %s723
        %s727 = smul.addr %s726, 8
        %s728 = scalar_lea.vmem %s7, %s727
        // Predicated region
        $region77: #{_l1_dice_loss_impl.1} parent=47 // pred_check
          %p729 = pneg %p258
        $region78: #{_l1_dice_loss_impl.1} parent=47 // pred_check_branch
          %731 = sbr.rel (%p729) target = $region80
        $region79: #{_l1_dice_loss_impl.1} parent=47 // pred_region
          _
        $region80: #{_l1_dice_loss_impl.1} parent=47 // pred_fallthru
          _
      $region48: #{_l1_dice_loss_impl.1} parent=5 // pred_fallthru
        _
      %p732 = scmp.le.s32.totalorder 2, %s25
      // Predicated region
      $region81: #{_l1_dice_loss_impl.1} parent=5 // pred_check
        %p733 = pneg %p732
      $region82: #{_l1_dice_loss_impl.1} parent=5 // pred_check_branch
        %735 = sbr.rel (%p733) target = $region84
      $region83: #{_l1_dice_loss_impl.1} parent=5 // pred_region
        %s736 = ssub.s32 %s25, 2
        // Predicated region
        $region85: #{_l1_dice_loss_impl.1} parent=83 // pred_check
          %p737 = pneg %p264
        $region86: #{_l1_dice_loss_impl.1} parent=83 // pred_check_branch
          %739 = sbr.rel (%p737) target = $region88
        $region87: #{_l1_dice_loss_impl.1} parent=83 // pred_region
          %p740 = scmp.lt.s32.totalorder %s36, 1
          %s741 = scalar_select %p740, %s36, 1
          %p742 = scmp.lt.s32.totalorder %s37, 0
          %s743 = scalar_select %p742, %s37, 0
          %s744 = sadd.s32 %s743, %s741
          %s745 = smul.addr %s744, 8
          %s746 = scalar_lea.vmem %s7, %s745
        $region88: #{_l1_dice_loss_impl.1} parent=83 // pred_fallthru
          _
      $region84: #{_l1_dice_loss_impl.1} parent=5 // pred_fallthru
        _
    $region6: #{_l1_dice_loss_impl.1} parent=1 // loop_footer
      %s29 = sadd.s32 1, %s25
    $region7: #{_l1_dice_loss_impl.1} parent=1 // loop_footer_branch
      %24 = sbr.rel target = $region3
    $region8: #{_l1_dice_loss_impl.1} parent=1 // loop_exit
      _
    %747 = vsyncpa [#allocation3], 1
    %s748 = scalar_lea.sflag [#allocation3], 1
    %749 = vsyncpa %s748, 1
    %750 = vsyncpa [#allocation5], 1
    %s751 = scalar_lea.sflag [#allocation5], 1
    %752 = vsyncpa %s751, 1
    %753 = vsyncpa [#allocation8], 1
    %s754 = scalar_lea.sflag [#allocation8], 1
    %755 = vsyncpa %s754, 1
    %756 = vsyncpa [#allocation11], 1
    %s757 = scalar_lea.sflag [#allocation11], 1
    %758 = vsyncpa %s757, 1

</llo_original>
